<compile_context>
chip_gen: v7x
topology: tpu7x:2x2x1
jax: 0.10.0
libtpu: 0.0.40
codegen_flags: <defaults>
</compile_context>

<pallas_src>
import functools

import jax
import jax.numpy as jnp
from jax.experimental import pallas as pl
from jax.experimental.pallas import tpu as pltpu


def _round_up(v, m):
    return (v + m - 1) // m * m


def _mlp_kernel(x_ref, w1_ref, b1_ref, w2_ref, b2_ref, o_ref):
    """Fused MLP forward for one batch tile:
        out = relu(x @ w1 + b1) @ w2 + b2
    Matmuls run on the MXU with f32 accumulation; bias add + ReLU run on the
    VPU in f32 (v5e-friendly). Biases are loaded once per grid step.
    """
    x = x_ref[...]                                   # (TB, Fp) compute dtype
    w1 = w1_ref[...]                                 # (Fp, Hp) compute dtype
    b1 = b1_ref[...]                                 # (1, Hp)  f32
    w2 = w2_ref[...]                                 # (Hp, Op) compute dtype
    b2 = b2_ref[...]                                 # (1, Op)  f32

    h = jnp.dot(x, w1, preferred_element_type=jnp.float32)       # (TB, Hp) f32
    h = jnp.maximum(h + b1, 0.0)                                  # f32 VPU
    y = jnp.dot(h.astype(w2.dtype), w2,
                preferred_element_type=jnp.float32)               # (TB, Op) f32
    o_ref[...] = (y + b2).astype(o_ref.dtype)


@functools.partial(jax.jit, static_argnames=("compute_dtype",))
def net_forward(x, w1, b1, w2, b2, *, compute_dtype=jnp.bfloat16):
    """Fused Pallas MLP forward.

    x:  (B, n_feature)
    w1: (n_feature, n_hidden)   b1: (n_hidden,) or (1, n_hidden)
    w2: (n_hidden, n_output)    b2: (n_output,) or (1, n_output)
    returns (B, n_output) in x.dtype (accumulation in f32).
    """
    B, F = x.shape
    H = w1.shape[1]
    O = w2.shape[1]

    LANE = 128
    Fp = _round_up(F, LANE)
    Hp = _round_up(H, LANE)
    Op = _round_up(O, LANE)

    # Batch tile: big enough to amortize per-step overhead, small enough that
    # the double-buffered x/out tiles + resident weights stay well inside the
    # default scoped VMEM on every generation (incl. v7x's 64 MiB physical).
    max_tile = 512 if compute_dtype == jnp.bfloat16 else 256
    if B <= max_tile:
        TB = _round_up(B, 8)
    else:
        TB = max_tile
    Bp = _round_up(B, TB)

    # Zero-padding is exact: padded x columns hit zero rows of w1, padded
    # hidden lanes get bias 0 -> relu(0) = 0 -> multiply zero rows of w2,
    # and padded output lanes are sliced off below.
    xp = jnp.pad(x, ((0, Bp - B), (0, Fp - F))).astype(compute_dtype)
    w1p = jnp.pad(w1, ((0, Fp - F), (0, Hp - H))).astype(compute_dtype)
    w2p = jnp.pad(w2, ((0, Hp - H), (0, Op - O))).astype(compute_dtype)
    b1p = jnp.pad(b1.reshape(1, H), ((0, 0), (0, Hp - H))).astype(jnp.float32)
    b2p = jnp.pad(b2.reshape(1, O), ((0, 0), (0, Op - O))).astype(jnp.float32)

    grid = (Bp // TB,)

    itemsize = jnp.dtype(compute_dtype).itemsize
    bytes_accessed = (xp.size * itemsize + w1p.size * itemsize
                      + w2p.size * itemsize + b1p.size * 4 + b2p.size * 4
                      + Bp * Op * jnp.dtype(x.dtype).itemsize)
    cost = pl.CostEstimate(
        flops=2 * Bp * (Fp * Hp + Hp * Op),
        transcendentals=0,
        bytes_accessed=bytes_accessed,
    )

    out_p = pl.pallas_call(
        _mlp_kernel,
        out_shape=jax.ShapeDtypeStruct((Bp, Op), x.dtype),
        grid=grid,
        in_specs=[
            pl.BlockSpec((TB, Fp), lambda i: (i, 0)),   # x: tiled over batch
            pl.BlockSpec((Fp, Hp), lambda i: (0, 0)),   # w1: VMEM-resident
            pl.BlockSpec((1, Hp), lambda i: (0, 0)),    # b1: VMEM-resident
            pl.BlockSpec((Hp, Op), lambda i: (0, 0)),   # w2: VMEM-resident
            pl.BlockSpec((1, Op), lambda i: (0, 0)),    # b2: VMEM-resident
        ],
        out_specs=pl.BlockSpec((TB, Op), lambda i: (i, 0)),
        compiler_params=pltpu.CompilerParams(
            dimension_semantics=("parallel",),          # v7x: shard over 2 TCs
        ),
        cost_estimate=cost,
    )(xp, w1p, b1p, w2p, b2p)

    return out_p[:B, :O]


def init_params(key, n_feature, n_hidden, n_output, dtype=jnp.float32):
    """Deterministic init mirroring torch.nn.Linear's default:
    U(-1/sqrt(fan_in), 1/sqrt(fan_in)) for both weight and bias."""
    k1, k2, k3, k4 = jax.random.split(key, 4)

    bound1 = 1.0 / jnp.sqrt(n_feature)
    w1 = jax.random.uniform(k1, (n_feature, n_hidden), dtype,
                            minval=-bound1, maxval=bound1)
    b1 = jax.random.uniform(k2, (1, n_hidden), dtype,
                            minval=-bound1, maxval=bound1)

    bound2 = 1.0 / jnp.sqrt(n_hidden)
    w2 = jax.random.uniform(k3, (n_hidden, n_output), dtype,
                            minval=-bound2, maxval=bound2)
    b2 = jax.random.uniform(k4, (1, n_output), dtype,
                            minval=-bound2, maxval=bound2)
    return w1, b1, w2, b2


if __name__ == "__main__":
    # Small shapes consistent with the module's forward:
    #   batch=8, n_feature=32, n_hidden=64, n_output=16
    batch, n_feature, n_hidden, n_output = 8, 32, 64, 16

    key = jax.random.PRNGKey(0)
    kx, kp = jax.random.split(key)

    x = jax.random.normal(kx, (batch, n_feature), dtype=jnp.float32)
    w1, b1, w2, b2 = init_params(kp, n_feature, n_hidden, n_output)

    # Plain-JAX reference (same math as the PyTorch forward).
    ref = jnp.maximum(x @ w1 + b1, 0.0) @ w2 + b2

    # Exact-precision path (f32 matmuls) — strict check.
    out_f32 = jax.block_until_ready(
        net_forward(x, w1, b1, w2, b2, compute_dtype=jnp.float32))
    assert out_f32.shape == (batch, n_output)
    assert jnp.allclose(out_f32, ref, atol=1e-5, rtol=1e-5)

    # Fast path (bf16 matmul inputs, f32 accumulation) — bf16-rounding check.
    out_bf16 = jax.block_until_ready(
        net_forward(x, w1, b1, w2, b2, compute_dtype=jnp.bfloat16))
    assert out_bf16.shape == (batch, n_output)
    assert jnp.allclose(out_bf16, ref, atol=5e-2, rtol=5e-2)

    print("KERNEL_OK")
</pallas_src>

<mosaic_0001>
module attributes {stable_mosaic.version = 11 : i64} {
  func.func @_mlp_kernel(%arg0: i32, %arg1: memref<8x128xf32, #tpu.memory_space<vmem>>, %arg2: memref<128x128xf32, #tpu.memory_space<vmem>>, %arg3: memref<1x128xf32, #tpu.memory_space<vmem>>, %arg4: memref<128x128xf32, #tpu.memory_space<vmem>>, %arg5: memref<1x128xf32, #tpu.memory_space<vmem>>, %arg6: memref<8x128xf32, #tpu.memory_space<vmem>>) attributes {dimension_semantics = [#tpu.dimension_semantics<parallel>], iteration_bounds = array<i64: 1>, scalar_prefetch = 0 : i64, scratch_operands = 0 : i64, tpu.core_type = #tpu.core_type<tc>, window_params = [{transform_indices = @transform_0, window_bounds = array<i64: 8, 128>}, {pipeline_mode = #tpu.pipeline_mode<synchronous>, transform_indices = @transform_1, window_bounds = array<i64: 128, 128>}, {pipeline_mode = #tpu.pipeline_mode<synchronous>, transform_indices = @transform_2, window_bounds = array<i64: 1, 128>}, {pipeline_mode = #tpu.pipeline_mode<synchronous>, transform_indices = @transform_3, window_bounds = array<i64: 128, 128>}, {pipeline_mode = #tpu.pipeline_mode<synchronous>, transform_indices = @transform_4, window_bounds = array<i64: 1, 128>}, {transform_indices = @transform_5, window_bounds = array<i64: 8, 128>}]} {
    %c0 = arith.constant 0 : index
    %c0_0 = arith.constant 0 : index
    %0 = vector.load %arg1[%c0, %c0_0] : memref<8x128xf32, #tpu.memory_space<vmem>>, vector<8x128xf32>
    %c0_1 = arith.constant 0 : index
    %c0_2 = arith.constant 0 : index
    %1 = vector.load %arg2[%c0_1, %c0_2] : memref<128x128xf32, #tpu.memory_space<vmem>>, vector<128x128xf32>
    %c0_3 = arith.constant 0 : index
    %c0_4 = arith.constant 0 : index
    %2 = vector.load %arg3[%c0_3, %c0_4] : memref<1x128xf32, #tpu.memory_space<vmem>>, vector<1x128xf32>
    %c0_5 = arith.constant 0 : index
    %c0_6 = arith.constant 0 : index
    %3 = vector.load %arg4[%c0_5, %c0_6] : memref<128x128xf32, #tpu.memory_space<vmem>>, vector<128x128xf32>
    %c0_7 = arith.constant 0 : index
    %c0_8 = arith.constant 0 : index
    %4 = vector.load %arg5[%c0_7, %c0_8] : memref<1x128xf32, #tpu.memory_space<vmem>>, vector<1x128xf32>
    %cst = arith.constant dense<0.000000e+00> : vector<8x128xf32>
    %5 = tpu.matmul %0, %1, %cst {dimension_numbers = #tpu.dot_dimension_numbers<[1], [0], [0], [1], [0, 0, 1, 1], [], []>} : vector<8x128xf32>, vector<128x128xf32>, vector<8x128xf32> -> vector<8x128xf32>
    %6 = vector.broadcast %2 : vector<1x128xf32> to vector<8x128xf32>
    %7 = arith.addf %5, %6 : vector<8x128xf32>
    %cst_9 = arith.constant 0.000000e+00 : f32
    %8 = vector.broadcast %cst_9 : f32 to vector<8x128xf32>
    %9 = arith.maximumf %7, %8 : vector<8x128xf32>
    %cst_10 = arith.constant dense<0.000000e+00> : vector<8x128xf32>
    %10 = tpu.matmul %9, %3, %cst_10 {dimension_numbers = #tpu.dot_dimension_numbers<[1], [0], [0], [1], [0, 0, 1, 1], [], []>} : vector<8x128xf32>, vector<128x128xf32>, vector<8x128xf32> -> vector<8x128xf32>
    %11 = vector.broadcast %4 : vector<1x128xf32> to vector<8x128xf32>
    %12 = arith.addf %10, %11 : vector<8x128xf32>
    %c0_11 = arith.constant 0 : index
    %c0_12 = arith.constant 0 : index
    %13 = vector.load %arg6[%c0_11, %c0_12] : memref<8x128xf32, #tpu.memory_space<vmem>>, vector<8x128xf32>
    tpu.vector_store %arg6[%c0_11, %c0_12], %12 {strides = array<i32>} : memref<8x128xf32, #tpu.memory_space<vmem>>, vector<8x128xf32>,
    return
  }
  func.func @transform_0(%arg0: i32) -> (i32, i32) {
    %c0_i32 = arith.constant 0 : i32
    %c0_i32_0 = arith.constant 0 : i32
    return %arg0, %c0_i32 : i32, i32
  }
  func.func @transform_1(%arg0: i32) -> (i32, i32) {
    %c0_i32 = arith.constant 0 : i32
    %c0_i32_0 = arith.constant 0 : i32
    %c0_i32_1 = arith.constant 0 : i32
    return %c0_i32, %c0_i32_0 : i32, i32
  }
  func.func @transform_2(%arg0: i32) -> (i32, i32) {
    %c0_i32 = arith.constant 0 : i32
    %c0_i32_0 = arith.constant 0 : i32
    %c0_i32_1 = arith.constant 0 : i32
    return %c0_i32, %c0_i32_0 : i32, i32
  }
  func.func @transform_3(%arg0: i32) -> (i32, i32) {
    %c0_i32 = arith.constant 0 : i32
    %c0_i32_0 = arith.constant 0 : i32
    %c0_i32_1 = arith.constant 0 : i32
    return %c0_i32, %c0_i32_0 : i32, i32
  }
  func.func @transform_4(%arg0: i32) -> (i32, i32) {
    %c0_i32 = arith.constant 0 : i32
    %c0_i32_0 = arith.constant 0 : i32
    %c0_i32_1 = arith.constant 0 : i32
    return %c0_i32, %c0_i32_0 : i32, i32
  }
  func.func @transform_5(%arg0: i32) -> (i32, i32) {
    %c0_i32 = arith.constant 0 : i32
    %c0_i32_0 = arith.constant 0 : i32
    return %arg0, %c0_i32 : i32, i32
  }
}

</mosaic_0001>

<llo_original>
// kernel: net_forward.1
$region0: #{net_forward.1}
  #allocation0 [shape = 'u32[]', space=smem, size = 0x4, offset = 0x4, fixed_abs, tag = 'smem constant byte address 0x4 - core index']
  #allocation1 [shape = 'u32[144,128]{1,0:T(1,128)}', space=vmem, size = 0x12000, scoped, tag = 'internal scratch']
  %s0 = inlined_call_operand.vmem [shape: f32[8,128], index: 0, kind: input, shape index: {}]
  %s1 = inlined_call_operand.vmem [shape: f32[128,128], index: 1, kind: input, shape index: {}]
  %s2 = inlined_call_operand.vmem [shape: f32[1,128], index: 2, kind: input, shape index: {}]
  %s3 = inlined_call_operand.vmem [shape: f32[128,128], index: 3, kind: input, shape index: {}]
  %s4 = inlined_call_operand.vmem [shape: f32[1,128], index: 4, kind: input, shape index: {}]
  %s5 = inlined_call_operand.hbm [shape: f32[8,128], index: 5, kind: output, shape index: {}]
  %s6 = sld [smem:[#allocation0]]
  $region30: #{net_forward.1} parent=0
    _
  %s8 = ssub.s32 1, %s6
  %s9 = scalar_select 0, %s8, %s6
  $region1: #{net_forward.1} parent=0
    #allocation2 [shape = 'u8[4096]{0}', space=vmem, size = 0x1000, scoped, tag = 'output window, operand 0, single buffered']
    #allocation3 [shape = 's32[1]{0}', space=sflag, size = 0x4, scoped, tag = 'scoped memory for net_forward.1']
    %10 = vsyncpa [#allocation3], 0
    // Predicated region
    $region2: #{net_forward.1} parent=1 // pred_check
      _
    $region3: #{net_forward.1} parent=1 // pred_check_branch
      %12 = sbr.rel (0) target = $region5
    $region4: #{net_forward.1} parent=1 // pred_region
      _
    $region5: #{net_forward.1} parent=1 // pred_fallthru
      _
    // Predicated region
    $region6: #{net_forward.1} parent=1 // pred_check
      _
    $region7: #{net_forward.1} parent=1 // pred_check_branch
      %14 = sbr.rel (0) target = $region9
    $region8: #{net_forward.1} parent=1 // pred_region
      _
    $region9: #{net_forward.1} parent=1 // pred_fallthru
      _
    // Predicated region
    $region10: #{net_forward.1} parent=1 // pred_check
      _
    $region11: #{net_forward.1} parent=1 // pred_check_branch
      %16 = sbr.rel (0) target = $region13
    $region12: #{net_forward.1} parent=1 // pred_region
      _
    $region13: #{net_forward.1} parent=1 // pred_fallthru
      _
    // Predicated region
    $region14: #{net_forward.1} parent=1 // pred_check
      _
    $region15: #{net_forward.1} parent=1 // pred_check_branch
      %18 = sbr.rel (0) target = $region17
    $region16: #{net_forward.1} parent=1 // pred_region
      _
    $region17: #{net_forward.1} parent=1 // pred_fallthru
      _
    // Predicated region
    $region18: #{net_forward.1} parent=1 // pred_check
      _
    $region19: #{net_forward.1} parent=1 // pred_check_branch
      %20 = sbr.rel (0) target = $region21
    $region20: #{net_forward.1} parent=1 // pred_region
      _
    $region21: #{net_forward.1} parent=1 // pred_fallthru
      _
    %v21 = vld [vmem:[%s0] sm:$0xff]
    %v22 = vld [vmem:[%s1] sm:$0xff]
    %v23 = vld [vmem:[%s1 + $0x8] sm:$0xff]
    %v24 = vld [vmem:[%s1 + $0x10] sm:$0xff]
    %v25 = vld [vmem:[%s1 + $0x18] sm:$0xff]
    %v26 = vld [vmem:[%s1 + $0x20] sm:$0xff]
    %v27 = vld [vmem:[%s1 + $0x28] sm:$0xff]
    %v28 = vld [vmem:[%s1 + $0x30] sm:$0xff]
    %v29 = vld [vmem:[%s1 + $0x38] sm:$0xff]
    %v30 = vld [vmem:[%s1 + $0x40] sm:$0xff]
    %v31 = vld [vmem:[%s1 + $0x48] sm:$0xff]
    %v32 = vld [vmem:[%s1 + $0x50] sm:$0xff]
    %v33 = vld [vmem:[%s1 + $0x58] sm:$0xff]
    %v34 = vld [vmem:[%s1 + $0x60] sm:$0xff]
    %v35 = vld [vmem:[%s1 + $0x68] sm:$0xff]
    %v36 = vld [vmem:[%s1 + $0x70] sm:$0xff]
    %v37 = vld [vmem:[%s1 + $0x78] sm:$0xff]
    %v38 = vld [vmem:[%s2] sm:$0x1]
    %v39 = vld [vmem:[%s3] sm:$0xff]
    %v40 = vld [vmem:[%s3 + $0x8] sm:$0xff]
    %v41 = vld [vmem:[%s3 + $0x10] sm:$0xff]
    %v42 = vld [vmem:[%s3 + $0x18] sm:$0xff]
    %v43 = vld [vmem:[%s3 + $0x20] sm:$0xff]
    %v44 = vld [vmem:[%s3 + $0x28] sm:$0xff]
    %v45 = vld [vmem:[%s3 + $0x30] sm:$0xff]
    %v46 = vld [vmem:[%s3 + $0x38] sm:$0xff]
    %v47 = vld [vmem:[%s3 + $0x40] sm:$0xff]
    %v48 = vld [vmem:[%s3 + $0x48] sm:$0xff]
    %v49 = vld [vmem:[%s3 + $0x50] sm:$0xff]
    %v50 = vld [vmem:[%s3 + $0x58] sm:$0xff]
    %v51 = vld [vmem:[%s3 + $0x60] sm:$0xff]
    %v52 = vld [vmem:[%s3 + $0x68] sm:$0xff]
    %v53 = vld [vmem:[%s3 + $0x70] sm:$0xff]
    %v54 = vld [vmem:[%s3 + $0x78] sm:$0xff]
    %v55 = vld [vmem:[%s4] sm:$0x1]
    %v57 = vlaneseq
    %v58 = vshrl.u32 %v57, 7
    %v59 = vsub.s32 0, %v58
    %v60 = vrot.slane %v38, %v59
    %62 = vmatprep.subr.mxu0 0.0
    %63 = vmatpush1.msra.mxu0 %v22
    %64 = vmatprep.subr.mxu0 0.0
    %65 = vmatpush1.msra.mxu0 %v23
    %66 = vmatprep.subr.mxu0 0.0
    %67 = vmatpush1.msra.mxu0 %v24
    %68 = vmatprep.subr.mxu0 0.0
    %69 = vmatpush1.msra.mxu0 %v25
    %70 = vmatprep.subr.mxu0 0.0
    %71 = vmatpush1.msra.mxu0 %v26
    %72 = vmatprep.subr.mxu0 0.0
    %73 = vmatpush1.msra.mxu0 %v27
    %74 = vmatprep.subr.mxu0 0.0
    %75 = vmatpush1.msra.mxu0 %v28
    %76 = vmatprep.subr.mxu0 0.0
    %77 = vmatpush1.msra.mxu0 %v29
    %78 = vmatprep.subr.mxu0 0.0
    %79 = vmatpush1.msra.mxu0 %v30
    %80 = vmatprep.subr.mxu0 0.0
    %81 = vmatpush1.msra.mxu0 %v31
    %82 = vmatprep.subr.mxu0 0.0
    %83 = vmatpush1.msra.mxu0 %v32
    %84 = vmatprep.subr.mxu0 0.0
    %85 = vmatpush1.msra.mxu0 %v33
    %86 = vmatprep.subr.mxu0 0.0
    %87 = vmatpush1.msra.mxu0 %v34
    %88 = vmatprep.subr.mxu0 0.0
    %89 = vmatpush1.msra.mxu0 %v35
    %90 = vmatprep.subr.mxu0 0.0
    %91 = vmatpush1.msra.mxu0 %v36
    %92 = vmatprep.subr.mxu0 0.0
    %93 = vmatpush1.msra.mxu0 %v37
    %94 = vmatprep.subr.mxu0 0.0
    %95 = vmatpush1.msra.mxu0 0.0
    %96 = vmatprep.subr.mxu0 0.0
    %97 = vmatpush1.msra.mxu0 0.0
    %98 = vmatprep.subr.mxu0 0.0
    %99 = vmatpush1.msra.mxu0 0.0
    %100 = vmatprep.subr.mxu0 0.0
    %101 = vmatpush1.msra.mxu0 0.0
    %102 = vmatprep.subr.mxu0 0.0
    %103 = vmatpush1.msra.mxu0 0.0
    %104 = vmatprep.subr.mxu0 0.0
    %105 = vmatpush1.msra.mxu0 0.0
    %106 = vmatprep.subr.mxu0 0.0
    %107 = vmatpush1.msra.mxu0 0.0
    %108 = vmatprep.subr.mxu0 0.0
    %109 = vmatpush1.msra.mxu0 0.0
    %110 = vmatprep.subr.mxu0 0.0
    %111 = vmatpush1.msra.mxu0 0.0
    %112 = vmatprep.subr.mxu0 0.0
    %113 = vmatpush1.msra.mxu0 0.0
    %114 = vmatprep.subr.mxu0 0.0
    %115 = vmatpush1.msra.mxu0 0.0
    %116 = vmatprep.subr.mxu0 0.0
    %117 = vmatpush1.msra.mxu0 0.0
    %118 = vmatprep.subr.mxu0 0.0
    %119 = vmatpush1.msra.mxu0 0.0
    %120 = vmatprep.subr.mxu0 0.0
    %121 = vmatpush1.msra.mxu0 0.0
    %122 = vmatprep.subr.mxu0 0.0
    %123 = vmatpush1.msra.mxu0 0.0
    %124 = vmatprep.subr.mxu0 0.0
    %125 = vmatpush1.msra.mxu0 0.0
    %126 = vmatprep.mubr.f32.mxu0 0.0
    %127 = vmatmul.mubr.f32.gmra.mrb[0].mxu0 %v21
    %v128 = vpop.f32.mrb[0].mxu0
    %v129 = vadd.f32 %v60, %v128
    %v130 = vpop.f32.mrb[0].mxu0
    %131 = vdwg.mxu0
    %v132 = vmax.f32 %v129, 0.0
    %v134 = vlaneseq
    %v135 = vshrl.u32 %v134, 7
    %v136 = vsub.s32 0, %v135
    %v137 = vrot.slane %v55, %v136
    %139 = vmatprep.subr.mxu0 0.0
    %140 = vmatpush1.msra.mxu0 %v39
    %141 = vmatprep.subr.mxu0 0.0
    %142 = vmatpush1.msra.mxu0 %v40
    %143 = vmatprep.subr.mxu0 0.0
    %144 = vmatpush1.msra.mxu0 %v41
    %145 = vmatprep.subr.mxu0 0.0
    %146 = vmatpush1.msra.mxu0 %v42
    %147 = vmatprep.subr.mxu0 0.0
    %148 = vmatpush1.msra.mxu0 %v43
    %149 = vmatprep.subr.mxu0 0.0
    %150 = vmatpush1.msra.mxu0 %v44
    %151 = vmatprep.subr.mxu0 0.0
    %152 = vmatpush1.msra.mxu0 %v45
    %153 = vmatprep.subr.mxu0 0.0
    %154 = vmatpush1.msra.mxu0 %v46
    %155 = vmatprep.subr.mxu0 0.0
    %156 = vmatpush1.msra.mxu0 %v47
    %157 = vmatprep.subr.mxu0 0.0
    %158 = vmatpush1.msra.mxu0 %v48
    %159 = vmatprep.subr.mxu0 0.0
    %160 = vmatpush1.msra.mxu0 %v49
    %161 = vmatprep.subr.mxu0 0.0
    %162 = vmatpush1.msra.mxu0 %v50
    %163 = vmatprep.subr.mxu0 0.0
    %164 = vmatpush1.msra.mxu0 %v51
    %165 = vmatprep.subr.mxu0 0.0
    %166 = vmatpush1.msra.mxu0 %v52
    %167 = vmatprep.subr.mxu0 0.0
    %168 = vmatpush1.msra.mxu0 %v53
    %169 = vmatprep.subr.mxu0 0.0
    %170 = vmatpush1.msra.mxu0 %v54
    %171 = vmatprep.subr.mxu0 0.0
    %172 = vmatpush1.msra.mxu0 0.0
    %173 = vmatprep.subr.mxu0 0.0
    %174 = vmatpush1.msra.mxu0 0.0
    %175 = vmatprep.subr.mxu0 0.0
    %176 = vmatpush1.msra.mxu0 0.0
    %177 = vmatprep.subr.mxu0 0.0
    %178 = vmatpush1.msra.mxu0 0.0
    %179 = vmatprep.subr.mxu0 0.0
    %180 = vmatpush1.msra.mxu0 0.0
    %181 = vmatprep.subr.mxu0 0.0
    %182 = vmatpush1.msra.mxu0 0.0
    %183 = vmatprep.subr.mxu0 0.0
    %184 = vmatpush1.msra.mxu0 0.0
    %185 = vmatprep.subr.mxu0 0.0
    %186 = vmatpush1.msra.mxu0 0.0
    %187 = vmatprep.subr.mxu0 0.0
    %188 = vmatpush1.msra.mxu0 0.0
    %189 = vmatprep.subr.mxu0 0.0
    %190 = vmatpush1.msra.mxu0 0.0
    %191 = vmatprep.subr.mxu0 0.0
    %192 = vmatpush1.msra.mxu0 0.0
    %193 = vmatprep.subr.mxu0 0.0
    %194 = vmatpush1.msra.mxu0 0.0
    %195 = vmatprep.subr.mxu0 0.0
    %196 = vmatpush1.msra.mxu0 0.0
    %197 = vmatprep.subr.mxu0 0.0
    %198 = vmatpush1.msra.mxu0 0.0
    %199 = vmatprep.subr.mxu0 0.0
    %200 = vmatpush1.msra.mxu0 0.0
    %201 = vmatprep.subr.mxu0 0.0
    %202 = vmatpush1.msra.mxu0 0.0
    %203 = vmatprep.mubr.f32.mxu0 0.0
    %204 = vmatmul.mubr.f32.gmra.mrb[0].mxu0 %v132
    %v205 = vpop.f32.mrb[0].mxu0
    %v206 = vadd.f32 %v137, %v205
    %v207 = vpop.f32.mrb[0].mxu0
    %208 = vdwg.mxu0
    %209 = vst [vmem:[#allocation2] sm:$0xff] %v206
    // Predicated region
    $region22: #{net_forward.1} parent=1 // pred_check
      _
    $region23: #{net_forward.1} parent=1 // pred_check_branch
      %211 = sbr.rel (0) target = $region25
    $region24: #{net_forward.1} parent=1 // pred_region
      %s213 = ssub.s32 128, 128
      %214 = vsyncadd [#allocation3], %s213
      %s216 = sshll.u32 [#allocation2], 4
      %s217 = int_to_ptr.vmem [resolvable:$true] %s216
      %219 = dma.vmem_to_hbm [thread:$0]  %s217, 128, %s5, [#allocation3]
    $region25: #{net_forward.1} parent=1 // pred_fallthru
      _
    // Predicated region
    $region26: #{net_forward.1} parent=1 // pred_check
      _
    $region27: #{net_forward.1} parent=1 // pred_check_branch
      %221 = sbr.rel (0) target = $region29
    $region28: #{net_forward.1} parent=1 // pred_region
      %222 = dma.done [#allocation3], 128
    $region29: #{net_forward.1} parent=1 // pred_fallthru
      _
    %223 = vsyncpa [#allocation3], 1

</llo_original>
